<compile_context>
chip_gen: v5e
topology: v5e:2x2
jax: 0.10.0
libtpu: 0.0.40
codegen_flags: <defaults>
</compile_context>

<pallas_src>
import functools

import jax
import jax.numpy as jnp
from jax.experimental import pallas as pl
from jax.experimental.pallas import tpu as pltpu

_MIB = 1024 * 1024


def _round_up(x, m):
    return (x + m - 1) // m * m


def _vmem_capacity_bytes():
    """Physical VMEM of the current TPU generation (v7x=64MiB, v5e/v6e=128MiB)."""
    try:
        info = pltpu.get_tpu_info()
        for name in ("vmem_capacity_bytes", "vmem_bytes", "vmem_size_bytes"):
            v = getattr(info, name, None)
            if v:
                return int(v)
    except Exception:
        pass
    try:
        kind = jax.devices()[0].device_kind.lower()
    except Exception:
        kind = ""
    if "v5" in kind or "v6" in kind:
        return 128 * _MIB
    return 64 * _MIB  # conservative default (covers v7x's 64 MiB)


def _batch_tile_candidates(B):
    """Divisors of B legal as an output sublane block (multiple of 8 or == B).

    When B >= 16, prefer <= B//2 so the 'parallel' batch axis has >= 2 blocks
    (feeds the second TensorCore on v7x); the extra grid step is negligible on
    single-TC chips."""
    cands = [d for d in range(B, 0, -1) if B % d == 0 and (d % 8 == 0 or d == B)]
    if B >= 16:
        split = [d for d in cands if d <= B // 2]
        if split:
            cands = split
    return cands  # descending


def _pick_b_tile(B, bytes_for_tile, per_block_cap):
    cands = _batch_tile_candidates(B)
    for d in cands:
        if bytes_for_tile(d) <= per_block_cap:
            return d
    return min(cands)


def _pick_hw_tile(HW, c_pad, itemsize, per_block_cap):
    """Largest multiple of 128 dividing HW whose one-batch-row slab fits the cap."""
    best = None
    for m in range(128, HW + 1, 128):
        if HW % m == 0 and c_pad * m * itemsize <= per_block_cap:
            best = m
    if best is None:
        for m in range(128, HW + 1, 128):
            if HW % m == 0:
                best = m
                break
    if best is None:
        best = HW  # no multiple-of-128 divisor: full HW is always a legal block
    return best


def _det_g_from_state(sv0, sv1):
    """2x2 density matrix entries -> information-metric-tensor determinant."""
    a = jax.nn.sigmoid(sv0)                    # rho[0,0]
    b = 1.0 - a                                # rho[1,1] (coherence)
    c_real = jnp.tanh(sv1) * jnp.sqrt(a * b)   # rho[0,1] (entanglement, real)
    delta_c = b - 0.5
    delta_e = jnp.abs(c_real) - 0.25
    g00 = delta_c * delta_c + 1e-06
    g11 = delta_e * delta_e + 1e-06
    g01 = delta_c * delta_e
    return g00 * g11 - g01 * g01


def _cmst_fused_kernel(x_ref, w_ref, detg_ref):
    # x_ref:   [b_tile, C*HW]  activations, channel-major lanes (lane = c*HW + j)
    # w_ref:   [2, C*HW]       conv weight repeated over HW, pre-scaled by 1/HW
    # detg_ref:[b_tile, 1]
    x = x_ref[...].astype(jnp.float32)
    w = w_ref[...]
    sv0 = jnp.sum(x * w[0:1, :], axis=1, keepdims=True)   # [b_tile, 1]
    sv1 = jnp.sum(x * w[1:2, :], axis=1, keepdims=True)
    detg_ref[...] = _det_g_from_state(sv0, sv1).astype(detg_ref.dtype)


def _cmst_tiled_kernel(x_ref, w_ref, detg_ref, acc_ref, *, inv_hw):
    # x_ref:   [b_tile, C, hw_tile]  activation tile (lane axis = spatial)
    # w_ref:   [2, C]                1x1 conv weight
    # detg_ref:[b_tile, 1]           output block (resident across HW axis)
    # acc_ref: [b_tile, C] f32       running spatial mean (per-tile 1/HW scaling)
    hw_idx = pl.program_id(1)

    @pl.when(hw_idx == 0)
    def _init():
        acc_ref[...] = jnp.zeros_like(acc_ref)

    acc_ref[...] += jnp.sum(x_ref[...].astype(jnp.float32), axis=2) * inv_hw

    @pl.when(hw_idx == pl.num_programs(1) - 1)
    def _epilogue():
        acc = acc_ref[...]                                   # [b_tile, C] spatial mean
        w = w_ref[...]                                       # [2, C]
        sv0 = jnp.sum(acc * w[0:1, :], axis=1, keepdims=True)
        sv1 = jnp.sum(acc * w[1:2, :], axis=1, keepdims=True)
        detg_ref[...] = _det_g_from_state(sv0, sv1).astype(detg_ref.dtype)


def cmst_adapter_forward(x_nchw, weight_qc, *, block_cap_bytes=None):
    """CMST_Neural_Adapter.forward.

    x_nchw: [B, C, H, W]; weight_qc: [2, C] (== conv weight [2, C, 1, 1]).
    Returns (x_nchw, det_g [B]).  `block_cap_bytes` overrides the per-input
    VMEM block budget (testing hook to force the HW-tiled path)."""
    B, C, H, W = x_nchw.shape
    HW = H * W
    itemsize = jnp.dtype(x_nchw.dtype).itemsize
    w_f32 = weight_qc.astype(jnp.float32)

    vmem_cap = _vmem_capacity_bytes()
    # Requested pipelined-VMEM: ~48 MiB on v7x, ~96 MiB on v5e/v6e.
    vmem_limit = min(vmem_cap * 3 // 4, 96 * _MIB)
    slack = 1 * _MIB
    vmem_ceiling = max(32 * _MIB, vmem_cap - 8 * _MIB)

    # ---------------- fast path: whole (b_tile, C*HW) slab per step ----------------
    w_fast_bytes = 2 * C * HW * 4
    cap_fast = (vmem_limit - 2 * w_fast_bytes - slack) // 2
    if block_cap_bytes is not None:
        cap_fast = block_cap_bytes

    def fast_bytes(d):  # VMEM footprint of one input buffer (sublanes pad to 8)
        return _round_up(d, 8) * C * HW * itemsize

    b_tile_fast = None
    if cap_fast > 0:
        cand = _pick_b_tile(B, fast_bytes, cap_fast)
        if fast_bytes(cand) <= cap_fast:
            b_tile_fast = cand

    if b_tile_fast is not None:
        b_tile = b_tile_fast
        x2 = x_nchw.reshape(B, C * HW)   # free: contiguous NCHW reshape
        # 1x1 conv + spatial mean folded into one lane-weight vector per quantum
        # channel: w_rep[q, c*HW + j] = W[q, c] / HW.
        w_rep = jnp.repeat(w_f32 * (1.0 / float(HW)), HW, axis=1)   # [2, C*HW]

        vmem_needed = 2 * fast_bytes(b_tile) + 2 * w_fast_bytes + 2 * slack
        vmem_limit = min(max(vmem_limit, vmem_needed), vmem_ceiling)

        det_g = pl.pallas_call(
            _cmst_fused_kernel,
            out_shape=jax.ShapeDtypeStruct((B, 1), jnp.float32),
            grid_spec=pltpu.PrefetchScalarGridSpec(
                num_scalar_prefetch=0,
                grid=(B // b_tile,),
                in_specs=[
                    pl.BlockSpec((b_tile, C * HW), lambda b: (b, 0)),
                    pl.BlockSpec((2, C * HW), lambda b: (0, 0)),
                ],
                out_specs=pl.BlockSpec((b_tile, 1), lambda b: (b, 0)),
            ),
            compiler_params=pltpu.CompilerParams(
                dimension_semantics=("parallel",),
                vmem_limit_bytes=int(vmem_limit),
            ),
        )(x2, w_rep)
        return x_nchw, det_g.reshape(B)

    # --------------- tiled path: split HW (reduction axis last) --------------------
    c_pad = _round_up(C, 8)
    w_tiled_bytes = 2 * C * 4
    cap_tiled = (vmem_limit - 2 * w_tiled_bytes - slack) // 2
    if block_cap_bytes is not None:
        cap_tiled = block_cap_bytes
    cap_tiled = max(cap_tiled, 1)

    hw_tile = _pick_hw_tile(HW, c_pad, itemsize, cap_tiled)

    def tiled_bytes(d):  # VMEM footprint of one input buffer (C pads to sublanes)
        return d * c_pad * hw_tile * itemsize

    b_tile = _pick_b_tile(B, tiled_bytes, cap_tiled)
    x3 = x_nchw.reshape(B, C, HW)

    vmem_needed = 2 * tiled_bytes(b_tile) + 2 * w_tiled_bytes + 2 * slack
    vmem_limit = min(max(vmem_limit, vmem_needed), vmem_ceiling)

    kernel = functools.partial(_cmst_tiled_kernel, inv_hw=1.0 / float(HW))
    det_g = pl.pallas_call(
        kernel,
        out_shape=jax.ShapeDtypeStruct((B, 1), jnp.float32),
        grid_spec=pltpu.PrefetchScalarGridSpec(
            num_scalar_prefetch=0,
            grid=(B // b_tile, HW // hw_tile),
            in_specs=[
                pl.BlockSpec((b_tile, C, hw_tile), lambda b, h: (b, 0, h)),
                pl.BlockSpec((2, C), lambda b, h: (0, 0)),
            ],
            out_specs=pl.BlockSpec((b_tile, 1), lambda b, h: (b, 0)),
            scratch_shapes=[pltpu.VMEM((b_tile, C), jnp.float32)],
        ),
        compiler_params=pltpu.CompilerParams(
            dimension_semantics=("parallel", "arbitrary"),
            vmem_limit_bytes=int(vmem_limit),
        ),
    )(x3, w_f32)
    return x_nchw, det_g.reshape(B)


def _reference_forward(x_nchw, weight_qc):
    """Pure-JAX reference replicating the PyTorch forward (quantum_channels=2)."""
    mean_x = jnp.mean(x_nchw.astype(jnp.float32), axis=(2, 3))   # [B, C]
    sv = mean_x @ weight_qc.astype(jnp.float32).T                # [B, 2]
    return _det_g_from_state(sv[:, 0], sv[:, 1])


def make_orthogonal_weight(key, quantum_channels, input_channels):
    """Deterministic analogue of nn.init.orthogonal_ on a [Q, C, 1, 1] conv weight."""
    n = max(quantum_channels, input_channels)
    m = jax.random.normal(key, (n, n), dtype=jnp.float32)
    q, r = jnp.linalg.qr(m)
    q = q * jnp.sign(jnp.diag(r))[None, :]
    return q[:quantum_channels, :input_channels].astype(jnp.float32)


if __name__ == "__main__":
    base_key = jax.random.PRNGKey(0)

    def run_case(case_idx, B, C, H, W, block_cap_bytes=None):
        key = jax.random.fold_in(base_key, case_idx)
        kx, kw = jax.random.split(key)
        x = jax.random.normal(kx, (B, C, H, W), dtype=jnp.float32)
        weight = make_orthogonal_weight(kw, 2, C)        # [2, C] == conv [2, C, 1, 1]

        x_out, det_g = cmst_adapter_forward(x, weight, block_cap_bytes=block_cap_bytes)
        jax.block_until_ready(det_g)

        det_ref = _reference_forward(x, weight)
        assert x_out.shape == (B, C, H, W)
        assert det_g.shape == (B,)
        assert jnp.allclose(x_out, x)
        assert jnp.allclose(det_g, det_ref, atol=3e-6, rtol=2e-4), (det_g, det_ref)

    # Primary small shape matching the module's intended use (fused fast path).
    run_case(0, 2, 4, 16, 16)
    # Larger shape: batch tiling + >=2 batch blocks on the fused fast path.
    run_case(1, 16, 4, 64, 64)
    # Tiny forced block budget: exercises the HW-tiled accumulator fallback path.
    run_case(2, 16, 4, 64, 64, block_cap_bytes=64 * 1024)

    print("KERNEL_OK")
</pallas_src>

<mosaic_0001>
module attributes {stable_mosaic.version = 11 : i64} {
  func.func @_cmst_fused_kernel(%arg0: i32, %arg1: memref<2x1024xf32, #tpu.memory_space<vmem>>, %arg2: memref<2x1024xf32, #tpu.memory_space<vmem>>, %arg3: memref<2x1xf32, #tpu.memory_space<vmem>>) attributes {dimension_semantics = [#tpu.dimension_semantics<parallel>], iteration_bounds = array<i64: 1>, scalar_prefetch = 0 : i64, scratch_operands = 0 : i64, tpu.core_type = #tpu.core_type<tc>, window_params = [{transform_indices = @transform_0, window_bounds = array<i64: 2, 1024>}, {pipeline_mode = #tpu.pipeline_mode<synchronous>, transform_indices = @transform_1, window_bounds = array<i64: 2, 1024>}, {transform_indices = @transform_2, window_bounds = array<i64: 2, 1>}]} {
    %c0 = arith.constant 0 : index
    %c0_0 = arith.constant 0 : index
    %0 = vector.load %arg1[%c0, %c0_0] : memref<2x1024xf32, #tpu.memory_space<vmem>>, vector<2x1024xf32>
    %c0_1 = arith.constant 0 : index
    %c0_2 = arith.constant 0 : index
    %1 = vector.load %arg2[%c0_1, %c0_2] : memref<2x1024xf32, #tpu.memory_space<vmem>>, vector<2x1024xf32>
    %2 = vector.extract_strided_slice %1 {offsets = [0, 0], sizes = [1, 1024], strides = [1, 1]} : vector<2x1024xf32> to vector<1x1024xf32>
    %3 = vector.broadcast %2 : vector<1x1024xf32> to vector<2x1024xf32>
    %4 = arith.mulf %0, %3 : vector<2x1024xf32>
    %cst = arith.constant dense<0.000000e+00> : vector<2xf32>
    %5 = vector.multi_reduction <add>, %4, %cst [1] : vector<2x1024xf32> to vector<2xf32>
    %6 = vector.shape_cast %5 : vector<2xf32> to vector<2x1xf32>
    %7 = vector.extract_strided_slice %1 {offsets = [1, 0], sizes = [1, 1024], strides = [1, 1]} : vector<2x1024xf32> to vector<1x1024xf32>
    %8 = vector.broadcast %7 : vector<1x1024xf32> to vector<2x1024xf32>
    %9 = arith.mulf %0, %8 : vector<2x1024xf32>
    %cst_3 = arith.constant dense<0.000000e+00> : vector<2xf32>
    %10 = vector.multi_reduction <add>, %9, %cst_3 [1] : vector<2x1024xf32> to vector<2xf32>
    %11 = vector.shape_cast %10 : vector<2xf32> to vector<2x1xf32>
    %12 = arith.negf %6 : vector<2x1xf32>
    %13 = math.exp %12 : vector<2x1xf32>
    %cst_4 = arith.constant 1.000000e+00 : f32
    %14 = vector.broadcast %cst_4 : f32 to vector<2x1xf32>
    %15 = arith.addf %14, %13 : vector<2x1xf32>
    %16 = arith.divf %14, %15 : vector<2x1xf32>
    %cst_5 = arith.constant 1.000000e+00 : f32
    %17 = vector.broadcast %cst_5 : f32 to vector<2x1xf32>
    %18 = arith.subf %17, %16 : vector<2x1xf32>
    %19 = math.tanh %11 : vector<2x1xf32>
    %20 = arith.mulf %16, %18 : vector<2x1xf32>
    %21 = math.sqrt %20 : vector<2x1xf32>
    %22 = arith.mulf %19, %21 : vector<2x1xf32>
    %cst_6 = arith.constant 5.000000e-01 : f32
    %23 = vector.broadcast %cst_6 : f32 to vector<2x1xf32>
    %24 = arith.subf %18, %23 : vector<2x1xf32>
    %25 = math.absf %22 : vector<2x1xf32>
    %cst_7 = arith.constant 2.500000e-01 : f32
    %26 = vector.broadcast %cst_7 : f32 to vector<2x1xf32>
    %27 = arith.subf %25, %26 : vector<2x1xf32>
    %28 = arith.mulf %24, %24 : vector<2x1xf32>
    %cst_8 = arith.constant 9.99999997E-7 : f32
    %29 = vector.broadcast %cst_8 : f32 to vector<2x1xf32>
    %30 = arith.addf %28, %29 : vector<2x1xf32>
    %31 = arith.mulf %27, %27 : vector<2x1xf32>
    %cst_9 = arith.constant 9.99999997E-7 : f32
    %32 = vector.broadcast %cst_9 : f32 to vector<2x1xf32>
    %33 = arith.addf %31, %32 : vector<2x1xf32>
    %34 = arith.mulf %24, %27 : vector<2x1xf32>
    %35 = arith.mulf %30, %33 : vector<2x1xf32>
    %36 = arith.mulf %34, %34 : vector<2x1xf32>
    %37 = arith.subf %35, %36 : vector<2x1xf32>
    %c0_10 = arith.constant 0 : index
    %c0_11 = arith.constant 0 : index
    %38 = vector.load %arg3[%c0_10, %c0_11] : memref<2x1xf32, #tpu.memory_space<vmem>>, vector<2x1xf32>
    tpu.vector_store %arg3[%c0_10, %c0_11], %37 {strides = array<i32>} : memref<2x1xf32, #tpu.memory_space<vmem>>, vector<2x1xf32>,
    return
  }
  func.func @transform_0(%arg0: i32) -> (i32, i32) {
    %c0_i32 = arith.constant 0 : i32
    %c0_i32_0 = arith.constant 0 : i32
    return %arg0, %c0_i32 : i32, i32
  }
  func.func @transform_1(%arg0: i32) -> (i32, i32) {
    %c0_i32 = arith.constant 0 : i32
    %c0_i32_0 = arith.constant 0 : i32
    %c0_i32_1 = arith.constant 0 : i32
    return %c0_i32, %c0_i32_0 : i32, i32
  }
  func.func @transform_2(%arg0: i32) -> (i32, i32) {
    %c0_i32 = arith.constant 0 : i32
    %c0_i32_0 = arith.constant 0 : i32
    return %arg0, %c0_i32 : i32, i32
  }
}

</mosaic_0001>

<llo_original>
// kernel: tpu_custom_call.1
$region0: #{tpu_custom_call.1}
  #allocation0 [shape = 'u32[]', space=smem, size = 0x4, offset = 0x4, fixed_abs, tag = 'smem constant byte address 0x4 - core index']
  #allocation1 [shape = 'u32[72,128]{1,0:T(1,128)}', space=vmem, size = 0x9000, scoped, tag = 'internal scratch']
  %s0 = inlined_call_operand.hbm [shape: f32[2,1024], index: 0, kind: input, shape index: {}]
  %s1 = inlined_call_operand.hbm [shape: f32[2,1024], index: 1, kind: input, shape index: {}]
  %s2 = inlined_call_operand.vmem [shape: f32[2,1], index: 2, kind: output, shape index: {}]
  %s3 = sld [smem:[#allocation0]]
  $region26: #{tpu_custom_call.1} parent=0
    _
  %s5 = ssub.s32 1, %s3
  %s6 = scalar_select 0, %s5, %s3
  $region1: #{tpu_custom_call.1} parent=0
    #allocation2 [shape = 'u8[8192]{0}', space=vmem, size = 0x2000, scoped, tag = 'input window, operand 0, single buffered']
    #allocation3 [shape = 's32[1]{0}', space=sflag, size = 0x4, scoped, tag = 'scoped memory for tpu_custom_call.1']
    #allocation4 [shape = 'u8[8192]{0}', space=vmem, size = 0x2000, scoped, tag = 'input window, operand 1, single buffered']
    #allocation5 [shape = 's32[1]{0}', space=sflag, size = 0x4, scoped, tag = 'scoped memory for tpu_custom_call.1']
    %7 = vsyncpa [#allocation3], 0
    %8 = vsyncpa [#allocation5], 0
    // Predicated region
    $region2: #{tpu_custom_call.1} parent=1 // pred_check
      _
    $region3: #{tpu_custom_call.1} parent=1 // pred_check_branch
      %10 = sbr.rel (0) target = $region5
    $region4: #{tpu_custom_call.1} parent=1 // pred_region
      %12 = vsyncadd [#allocation3], 0
      %s14 = sshll.u32 %s0, 4
      %s15 = int_to_ptr.hbm [resolvable:$true] %s14
      %s16 = sshll.u32 [#allocation2], 4
      %s17 = int_to_ptr.vmem [resolvable:$true] %s16
      %19 = dma.hbm_to_vmem [thread:$0]  %s15, 256, %s17, [#allocation3]
    $region5: #{tpu_custom_call.1} parent=1 // pred_fallthru
      _
    // Predicated region
    $region6: #{tpu_custom_call.1} parent=1 // pred_check
      _
    $region7: #{tpu_custom_call.1} parent=1 // pred_check_branch
      %21 = sbr.rel (0) target = $region9
    $region8: #{tpu_custom_call.1} parent=1 // pred_region
      %23 = vsyncadd [#allocation5], 0
      %s25 = sshll.u32 %s1, 4
      %s26 = int_to_ptr.hbm [resolvable:$true] %s25
      %s27 = sshll.u32 [#allocation4], 4
      %s28 = int_to_ptr.vmem [resolvable:$true] %s27
      %30 = dma.hbm_to_vmem [thread:$0]  %s26, 256, %s28, [#allocation5]
    $region9: #{tpu_custom_call.1} parent=1 // pred_fallthru
      _
    // Predicated region
    $region10: #{tpu_custom_call.1} parent=1 // pred_check
      _
    $region11: #{tpu_custom_call.1} parent=1 // pred_check_branch
      %32 = sbr.rel (0) target = $region13
    $region12: #{tpu_custom_call.1} parent=1 // pred_region
      %34 = dma.done [#allocation3], 256
    $region13: #{tpu_custom_call.1} parent=1 // pred_fallthru
      _
    // Predicated region
    $region14: #{tpu_custom_call.1} parent=1 // pred_check
      _
    $region15: #{tpu_custom_call.1} parent=1 // pred_check_branch
      %36 = sbr.rel (0) target = $region17
    $region16: #{tpu_custom_call.1} parent=1 // pred_region
      %38 = dma.done [#allocation5], 256
    $region17: #{tpu_custom_call.1} parent=1 // pred_fallthru
      _
    %v39 = vld [vmem:[#allocation2] sm:$0xff]
    %v40 = vld [vmem:[#allocation2 + $0x8] sm:$0xff]
    %v41 = vld [vmem:[#allocation4] sm:$0xff]
    %v42 = vld [vmem:[#allocation4 + $0x8] sm:$0xff]
    %v45 = vperm.slane %v41, 0
    %v46 = vperm.slane %v41, 2
    %v47 = vperm.slane %v41, 4
    %v48 = vperm.slane %v41, 6
    %v49 = vperm.slane %v42, 0
    %v50 = vperm.slane %v42, 2
    %v51 = vperm.slane %v42, 4
    %v52 = vperm.slane %v42, 6
    %v61 = vperm.slane %v45, 0
    %v62 = vperm.slane %v46, 0
    %v63 = vperm.slane %v47, 0
    %v64 = vperm.slane %v48, 0
    %v65 = vperm.slane %v49, 0
    %v66 = vperm.slane %v50, 0
    %v67 = vperm.slane %v51, 0
    %v68 = vperm.slane %v52, 0
    %v77 = vrot.slane %v62, 6
    %v78 = vrot.slane %v63, 4
    %v79 = vrot.slane %v64, 2
    %v80 = vrot.slane %v66, 6
    %v81 = vrot.slane %v67, 4
    %v82 = vrot.slane %v68, 2
    %vm83 = vcmask 1041408
    %v84 = vsel %vm83, %v61, %v77
    %vm85 = vcmask 1045508
    %v86 = vsel %vm85, %v78, %v79
    %vm87 = vcmask 1043456
    %v88 = vsel %vm87, %v84, %v86
    %v89 = vsel %vm83, %v65, %v80
    %v90 = vsel %vm85, %v81, %v82
    %v91 = vsel %vm87, %v89, %v90
    %v94 = vmul.f32 %v39, %v88
    %v95 = vmul.f32 %v40, %v91
    %98 = vst [vmem:[#allocation1] ss:$4 sm:$0xff] %v94
    %s99 = scalar_lea.vmem [#allocation1], 32
    %100 = vst [vmem:[%s99] ss:$4 sm:$0xff] %v95
    %v101 = vld.sshfl [vmem:[#allocation1] sm:$0xff pattern:$0x73625140]
    %v102 = vld.sshfl [vmem:[#allocation1 + $0x8] sm:$0xff pattern:$0x73625140]
    %v103 = vld.sshfl [vmem:[#allocation1 + $0x10] sm:$0xff pattern:$0x73625140]
    %v104 = vld.sshfl [vmem:[#allocation1 + $0x18] sm:$0xff pattern:$0x73625140]
    %v105 = vld.sshfl [vmem:[#allocation1 + $0x20] sm:$0xff pattern:$0x73625140]
    %v106 = vld.sshfl [vmem:[#allocation1 + $0x28] sm:$0xff pattern:$0x73625140]
    %v107 = vld.sshfl [vmem:[#allocation1 + $0x30] sm:$0xff pattern:$0x73625140]
    %v108 = vld.sshfl [vmem:[#allocation1 + $0x38] sm:$0xff pattern:$0x73625140]
    %v117 = vsel %vm83, %v101, 0.0
    %v118 = vsel %vm83, %v102, 0.0
    %v119 = vadd.f32 %v117, %v118
    %v120 = vsel %vm83, %v103, 0.0
    %v121 = vadd.f32 %v119, %v120
    %v122 = vsel %vm83, %v104, 0.0
    %v123 = vadd.f32 %v121, %v122
    %v124 = vsel %vm83, %v105, 0.0
    %v125 = vadd.f32 %v123, %v124
    %v126 = vsel %vm83, %v106, 0.0
    %v127 = vadd.f32 %v125, %v126
    %v128 = vsel %vm83, %v107, 0.0
    %v129 = vadd.f32 %v127, %v128
    %v130 = vsel %vm83, %v108, 0.0
    %v131 = vadd.f32 %v129, %v130
    %132 = vadd.xlane.f32.xlu0 %v131
    %v133 = vpop.xlane.xlu0 %132
    %v134 = vperm.slane %v41, 1
    %v135 = vperm.slane %v41, 3
    %v136 = vperm.slane %v41, 5
    %v137 = vperm.slane %v41, 7
    %v138 = vperm.slane %v42, 1
    %v139 = vperm.slane %v42, 3
    %v140 = vperm.slane %v42, 5
    %v141 = vperm.slane %v42, 7
    %v150 = vperm.slane %v134, 1
    %v151 = vperm.slane %v135, 1
    %v152 = vperm.slane %v136, 1
    %v153 = vperm.slane %v137, 1
    %v154 = vperm.slane %v138, 1
    %v155 = vperm.slane %v139, 1
    %v156 = vperm.slane %v140, 1
    %v157 = vperm.slane %v141, 1
    %v166 = vrot.slane %v151, 6
    %v167 = vrot.slane %v152, 4
    %v168 = vrot.slane %v153, 2
    %v169 = vrot.slane %v155, 6
    %v170 = vrot.slane %v156, 4
    %v171 = vrot.slane %v157, 2
    %v172 = vsel %vm83, %v150, %v166
    %v173 = vsel %vm85, %v167, %v168
    %v174 = vsel %vm87, %v172, %v173
    %v175 = vsel %vm83, %v154, %v169
    %v176 = vsel %vm85, %v170, %v171
    %v177 = vsel %vm87, %v175, %v176
    %v180 = vmul.f32 %v39, %v174
    %v181 = vmul.f32 %v40, %v177
    %184 = vst [vmem:[#allocation1] ss:$4 sm:$0xff] %v180
    %s185 = scalar_lea.vmem [#allocation1], 32
    %186 = vst [vmem:[%s185] ss:$4 sm:$0xff] %v181
    %v187 = vld.sshfl [vmem:[#allocation1] sm:$0xff pattern:$0x73625140]
    %v188 = vld.sshfl [vmem:[#allocation1 + $0x8] sm:$0xff pattern:$0x73625140]
    %v189 = vld.sshfl [vmem:[#allocation1 + $0x10] sm:$0xff pattern:$0x73625140]
    %v190 = vld.sshfl [vmem:[#allocation1 + $0x18] sm:$0xff pattern:$0x73625140]
    %v191 = vld.sshfl [vmem:[#allocation1 + $0x20] sm:$0xff pattern:$0x73625140]
    %v192 = vld.sshfl [vmem:[#allocation1 + $0x28] sm:$0xff pattern:$0x73625140]
    %v193 = vld.sshfl [vmem:[#allocation1 + $0x30] sm:$0xff pattern:$0x73625140]
    %v194 = vld.sshfl [vmem:[#allocation1 + $0x38] sm:$0xff pattern:$0x73625140]
    %v203 = vsel %vm83, %v187, 0.0
    %v204 = vsel %vm83, %v188, 0.0
    %v205 = vadd.f32 %v203, %v204
    %v206 = vsel %vm83, %v189, 0.0
    %v207 = vadd.f32 %v205, %v206
    %v208 = vsel %vm83, %v190, 0.0
    %v209 = vadd.f32 %v207, %v208
    %v210 = vsel %vm83, %v191, 0.0
    %v211 = vadd.f32 %v209, %v210
    %v212 = vsel %vm83, %v192, 0.0
    %v213 = vadd.f32 %v211, %v212
    %v214 = vsel %vm83, %v193, 0.0
    %v215 = vadd.f32 %v213, %v214
    %v216 = vsel %vm83, %v194, 0.0
    %v217 = vadd.f32 %v215, %v216
    %218 = vadd.xlane.f32.xlu0 %v217
    %v219 = vpop.xlane.xlu0 %218
    %v220 = vxor.u32 %v133, 2147483648
    %v221 = vmul.f32 %v220, 1.442695
    %v222 = vpow.pop %v221
    %v223 = vadd.f32 %v222, 1.0
    %v224 = vrcp.pop %v223
    %v225 = vmul.f32 %v223, %v224
    %v226 = vsub.f32 1.0, %v225
    %v227 = vmul.f32 %v224, %v226
    %v228 = vadd.f32 %v224, %v227
    %vm229 = vweird.f32 %v223
    %vm230 = vweird.f32 %v224
    %vm231 = vmor %vm229, %vm230
    %v232 = vsel %vm231, %v224, %v228
    %v233 = vand.u32 2147483647, %v223
    %vm234 = vcmp.eq.f32.partialorder %v233, 8.507059e+37
    %v235 = vand.u32 %v223, 2147483648
    %v236 = vor.u32 1.1754944e-38, %v235
    %v237 = vsel %vm234, %v236, %v232
    %v238 = vmul.f32 1.0, %v237
    %v239 = vsub.f32 1.0, %v238
    %v240 = vtanh.pop %v219
    %v241 = vmul.f32 %v238, %v239
    %v242 = vrsqrt.pop %v241
    %v243 = vmul.f32 %v242, %v241
    %v244 = vmul.f32 %v243, %v242
    %v245 = vmul.f32 0.5, %v244
    %v246 = vsub.f32 1.5, %v245
    %v247 = vmul.f32 %v242, %v246
    %v248 = vmul.f32 %v241, %v247
    %vm249 = vcmp.eq.f32.partialorder %v241, inf
    %v250 = vsel %vm249, %v241, %v248
    %vm251 = vcmp.eq.f32.partialorder %v241, 0.0
    %v252 = vand.u32 %v241, 2147483648
    %v253 = vsel %vm251, %v252, %v250
    %v254 = vmul.f32 %v240, %v253
    %v255 = vsub.f32 %v239, 0.5
    %v256 = vand.u32 2147483647, %v254
    %v257 = vsub.f32 %v256, 0.25
    %v258 = vmul.f32 %v255, %v255
    %v259 = vadd.f32 %v258, 1e-06
    %v260 = vmul.f32 %v257, %v257
    %v261 = vadd.f32 %v260, 1e-06
    %v262 = vmul.f32 %v255, %v257
    %v263 = vmul.f32 %v259, %v261
    %v264 = vmul.f32 %v262, %v262
    %v265 = vsub.f32 %v263, %v264
    %vm266 = vcmask 1024
    %267 = vst.msk [vmem:[%s2] sm:$0x3] %vm266, %v265
    // Predicated region
    $region18: #{tpu_custom_call.1} parent=1 // pred_check
      _
    $region19: #{tpu_custom_call.1} parent=1 // pred_check_branch
      %269 = sbr.rel (0) target = $region21
    $region20: #{tpu_custom_call.1} parent=1 // pred_region
      _
    $region21: #{tpu_custom_call.1} parent=1 // pred_fallthru
      _
    // Predicated region
    $region22: #{tpu_custom_call.1} parent=1 // pred_check
      _
    $region23: #{tpu_custom_call.1} parent=1 // pred_check_branch
      %271 = sbr.rel (0) target = $region25
    $region24: #{tpu_custom_call.1} parent=1 // pred_region
      _
    $region25: #{tpu_custom_call.1} parent=1 // pred_fallthru
      _
    %272 = vsyncpa [#allocation3], 1
    %273 = vsyncpa [#allocation5], 1

</llo_original>
